<compile_context>
chip_gen: v5e
topology: v5e:2x2
jax: 0.10.0
libtpu: 0.0.40
codegen_flags: <defaults>
</compile_context>

<pallas_src>
import functools

import jax
import jax.numpy as jnp
from jax.experimental import pallas as pl
from jax.experimental.pallas import tpu as pltpu

_LANE = 128
_SUBLANE = 8


def _round_up(x, m):
    return (x + m - 1) // m * m


def _softmax_xent_kernel(logits_ref, label_ref, partial_ref,
                         m_sc, l_sc, sy_sc, syxm_sc, *,
                         total_rows, total_cols, row_tile, col_tile, mask_cols):
    """One (row-tile, class-chunk) grid step.

    Online logsumexp over the class ("arbitrary") axis; each row tile writes its own
    disjoint partial-sum output block, so the row axis is "parallel".
    """
    i = pl.program_id(0)
    k = pl.program_id(1)
    nk = pl.num_programs(1)

    @pl.when(k == 0)
    def _():
        m_sc[...] = jnp.full_like(m_sc, -jnp.inf)
        l_sc[...] = jnp.zeros_like(l_sc)
        sy_sc[...] = jnp.zeros_like(sy_sc)
        syxm_sc[...] = jnp.zeros_like(syxm_sc)

    x = logits_ref[...].astype(jnp.float32)   # (TN, TC)
    y = label_ref[...].astype(jnp.float32)    # (TN, TC)

    if mask_cols:
        # Last class chunk may run past C: mask the padded lanes.
        col_ids = k * col_tile + jax.lax.broadcasted_iota(jnp.int32, (1, col_tile), 1)
        col_ok = col_ids < total_cols
        x = jnp.where(col_ok, x, -jnp.inf)
        y = jnp.where(col_ok, y, 0.0)

    m_old = m_sc[...]                                             # (TN, 1)
    m_new = jnp.maximum(m_old, jnp.max(x, axis=-1, keepdims=True))
    xm = x - m_new                                                # <= 0 on valid lanes

    # Rescale previously accumulated partials to the new running max.  m_old == -inf
    # only before any chunk has been absorbed (running sums are 0 then), so force the
    # correction to 0 to avoid 0 * -inf = NaN.
    delta = jnp.where(m_old == -jnp.inf, 0.0, m_old - m_new)      # (TN, 1)
    l_sc[...] = l_sc[...] * jnp.exp(delta) + jnp.sum(jnp.exp(xm), axis=-1, keepdims=True)
    yxm = y * (jnp.where(col_ok, xm, 0.0) if mask_cols else xm)   # avoid 0 * -inf
    syxm_sc[...] = (syxm_sc[...] + sy_sc[...] * delta
                    + jnp.sum(yxm, axis=-1, keepdims=True))
    sy_sc[...] = sy_sc[...] + jnp.sum(y, axis=-1, keepdims=True)
    m_sc[...] = m_new

    @pl.when(k == nk - 1)
    def _():
        # loss_row = lse * sum(y) - sum(y * (x - m))   (cancellation-safe form)
        lse = jnp.log(l_sc[...])
        per_row = lse * sy_sc[...] - syxm_sc[...]                 # (TN, 1)
        # Rows past the true batch size (last row tile) computed on stale/garbage VMEM
        # data; jnp.where is a true select, so NaN/Inf from dead rows is discarded here.
        # Do NOT replace this select with a multiplicative mask.
        row_ids = i * row_tile + jax.lax.broadcasted_iota(jnp.int32, (row_tile, 1), 0)
        per_row = jnp.where(row_ids < total_rows, per_row, 0.0)
        # Lane/sublane-aligned broadcast store; wrapper reads element [0, 0] per tile.
        partial_ref[...] = jnp.full(partial_ref.shape, jnp.sum(per_row), jnp.float32)


def _vmem_budget_bytes():
    try:
        cap = pltpu.get_tpu_info().vmem_capacity_bytes   # 128 MiB v5e/v6e, 64 MiB v7x
    except Exception:
        cap = 64 << 20                                    # conservative fallback
    # Use at most half a core's VMEM for tile sizing (~32 MiB ceiling), leaving headroom
    # for Mosaic internal scratch and neighbouring VMEM users.
    return int(min(cap // 2, 32 << 20))


def _choose_tiles(n, c, in_itemsize, budget):
    """Pad-aware tile sizing: lane-padded C, ~8 MiB input blocks, >= 8 pipeline steps."""
    c_pad = _round_up(max(c, 1), _LANE)
    # Per lane-padded element of one (tn, tc) step: 2 inputs x 2 pipeline buffers at the
    # input itemsize plus ~4 live f32 temporaries in the body.
    bytes_per_elem = 2 * 2 * in_itemsize + 4 * 4

    # Class-axis chunk: keep full C while even a minimal 8-row block stays within ~1/4 of
    # the budget; otherwise split on 128-lane multiples (online logsumexp across chunks).
    if _SUBLANE * c_pad * bytes_per_elem <= budget // 4:
        tc, tc_pad = c, c_pad
    else:
        tc = max(_LANE,
                 ((budget // 4) // (_SUBLANE * bytes_per_elem)) // _LANE * _LANE)
        tc_pad = tc

    # Row tile: cap at ~8 MiB per input block, stay inside the VMEM budget, and keep
    # >= 8 row tiles when N allows (pipeline depth + both v7x TensorCores get work).
    target_block_bytes = 8 << 20
    tn_block = (target_block_bytes // (tc_pad * max(in_itemsize, 1))) // _SUBLANE * _SUBLANE
    tn_vmem = (budget // (tc_pad * bytes_per_elem)) // _SUBLANE * _SUBLANE
    min_row_tiles = 8
    tn_split = _round_up(max(1, pl.cdiv(n, min_row_tiles)), _SUBLANE)
    if n <= _SUBLANE:
        tn = n                                 # block == full dim (sublane rule)
    else:
        tn = max(_SUBLANE, min(tn_block, tn_vmem, tn_split))
    return tn, tc, tc_pad


def softmax_with_cross_entropy(logits, label):
    """Pallas TPU equivalent of SoftmaxWithCrossEntropy.forward for (N, C) inputs."""
    assert logits.shape == label.shape and logits.ndim == 2
    n, c = logits.shape

    in_itemsize = max(jnp.dtype(logits.dtype).itemsize,
                      jnp.dtype(label.dtype).itemsize)
    budget = _vmem_budget_bytes()
    tn, tc, tc_pad = _choose_tiles(n, c, in_itemsize, budget)
    num_row_tiles = pl.cdiv(n, tn)
    num_c_tiles = pl.cdiv(c, tc)
    mask_cols = (tc != c) and (c % tc != 0)

    # Actual per-step footprint -> right-sized scoped-VMEM limit (plus slack), instead of
    # a blanket large limit.  Sublane padding depends on the input dtype packing.
    row_pad = _SUBLANE * max(1, 4 // in_itemsize)
    tn_pad = _round_up(tn, row_pad)
    step_bytes = (2 * 2 * tn_pad * tc_pad * in_itemsize   # 2 inputs, double-buffered
                  + 4 * tn_pad * tc_pad * 4)              # ~4 live f32 temporaries
    vmem_limit = max(8 << 20, step_bytes + (4 << 20))

    # TODO(synk): small-C (< 128) lane-dense repack (transpose so N maps to lanes) and a
    # hard-label (int32 class index) fast path would halve HBM traffic further.

    kernel = functools.partial(
        _softmax_xent_kernel,
        total_rows=n, total_cols=c, row_tile=tn, col_tile=tc, mask_cols=mask_cols)

    partials = pl.pallas_call(
        kernel,
        out_shape=jax.ShapeDtypeStruct((num_row_tiles, 8, 128), jnp.float32),
        grid_spec=pltpu.PrefetchScalarGridSpec(
            num_scalar_prefetch=0,
            grid=(num_row_tiles, num_c_tiles),
            in_specs=[
                pl.BlockSpec((tn, tc), lambda i, k: (i, k)),
                pl.BlockSpec((tn, tc), lambda i, k: (i, k)),
            ],
            out_specs=pl.BlockSpec((1, 8, 128), lambda i, k: (i, 0, 0)),
            scratch_shapes=[
                pltpu.VMEM((tn, 1), jnp.float32),   # running max m
                pltpu.VMEM((tn, 1), jnp.float32),   # running sum exp(x - m)
                pltpu.VMEM((tn, 1), jnp.float32),   # running sum y
                pltpu.VMEM((tn, 1), jnp.float32),   # running sum y*(x - m)
            ],
        ),
        compiler_params=pltpu.CompilerParams(
            dimension_semantics=("parallel", "arbitrary"),
            vmem_limit_bytes=int(vmem_limit),
        ),
    )(logits, label)

    # Each row tile broadcast its partial sum across its output block; take one element
    # per tile, finish the sum and the mean (/N) here.
    return jnp.sum(partials[:, 0, 0]) / jnp.float32(n)


def _reference(logits, label):
    logprobs = jax.nn.log_softmax(logits.astype(jnp.float32), axis=1)
    loss = -1.0 * jnp.sum(label.astype(jnp.float32) * logprobs, axis=1)
    return jnp.mean(loss)


if __name__ == "__main__":
    key = jax.random.PRNGKey(0)
    k1, k2 = jax.random.split(key)

    N, C = 8, 16
    logits = jax.random.normal(k1, (N, C), dtype=jnp.float32)
    # soft labels: rows sum to 1, deterministic
    raw = jax.random.uniform(k2, (N, C), dtype=jnp.float32)
    label = raw / jnp.sum(raw, axis=1, keepdims=True)

    loss = softmax_with_cross_entropy(logits, label)
    loss = jax.block_until_ready(loss)

    ref = _reference(logits, label)
    assert jnp.allclose(loss, ref, rtol=1e-5, atol=1e-5), (loss, ref)

    print("KERNEL_OK")
</pallas_src>

<mosaic_0001>
module attributes {stable_mosaic.version = 11 : i64} {
  func.func @_softmax_xent_kernel(%arg0: i32, %arg1: i32, %arg2: memref<8x16xf32, #tpu.memory_space<vmem>>, %arg3: memref<8x16xf32, #tpu.memory_space<vmem>>, %arg4: memref<1x8x128xf32, #tpu.memory_space<vmem>>, %arg5: memref<8x1xf32, #tpu.memory_space<vmem>>, %arg6: memref<8x1xf32, #tpu.memory_space<vmem>>, %arg7: memref<8x1xf32, #tpu.memory_space<vmem>>, %arg8: memref<8x1xf32, #tpu.memory_space<vmem>>) attributes {dimension_semantics = [#tpu.dimension_semantics<parallel>, #tpu.dimension_semantics<arbitrary>], iteration_bounds = array<i64: 1, 1>, scalar_prefetch = 0 : i64, scratch_operands = 4 : i64, tpu.core_type = #tpu.core_type<tc>, window_params = [{transform_indices = @transform_0, window_bounds = array<i64: 8, 16>}, {transform_indices = @transform_1, window_bounds = array<i64: 8, 16>}, {transform_indices = @transform_2, window_bounds = array<i64: 1, 8, 128>}]} {
    %c0_i32 = arith.constant 0 : i32
    %0 = arith.cmpi eq, %arg1, %c0_i32 : i32
    %1 = arith.extui %0 : i1 to i32
    %c0_i32_0 = arith.constant 0 : i32
    %2 = arith.cmpi ne, %1, %c0_i32_0 : i32
    scf.if %2 {
      %cst_29 = arith.constant 0xFF800000 : f32
      %42 = vector.broadcast %cst_29 : f32 to vector<8x1xf32>
      %c0_30 = arith.constant 0 : index
      %c0_31 = arith.constant 0 : index
      %43 = vector.load %arg5[%c0_30, %c0_31] : memref<8x1xf32, #tpu.memory_space<vmem>>, vector<8x1xf32>
      tpu.vector_store %arg5[%c0_30, %c0_31], %42 {strides = array<i32>} : memref<8x1xf32, #tpu.memory_space<vmem>>, vector<8x1xf32>,
      %cst_32 = arith.constant 0.000000e+00 : f32
      %44 = vector.broadcast %cst_32 : f32 to vector<8x1xf32>
      %c0_33 = arith.constant 0 : index
      %c0_34 = arith.constant 0 : index
      %45 = vector.load %arg6[%c0_33, %c0_34] : memref<8x1xf32, #tpu.memory_space<vmem>>, vector<8x1xf32>
      tpu.vector_store %arg6[%c0_33, %c0_34], %44 {strides = array<i32>} : memref<8x1xf32, #tpu.memory_space<vmem>>, vector<8x1xf32>,
      %cst_35 = arith.constant 0.000000e+00 : f32
      %46 = vector.broadcast %cst_35 : f32 to vector<8x1xf32>
      %c0_36 = arith.constant 0 : index
      %c0_37 = arith.constant 0 : index
      %47 = vector.load %arg7[%c0_36, %c0_37] : memref<8x1xf32, #tpu.memory_space<vmem>>, vector<8x1xf32>
      tpu.vector_store %arg7[%c0_36, %c0_37], %46 {strides = array<i32>} : memref<8x1xf32, #tpu.memory_space<vmem>>, vector<8x1xf32>,
      %cst_38 = arith.constant 0.000000e+00 : f32
      %48 = vector.broadcast %cst_38 : f32 to vector<8x1xf32>
      %c0_39 = arith.constant 0 : index
      %c0_40 = arith.constant 0 : index
      %49 = vector.load %arg8[%c0_39, %c0_40] : memref<8x1xf32, #tpu.memory_space<vmem>>, vector<8x1xf32>
      tpu.vector_store %arg8[%c0_39, %c0_40], %48 {strides = array<i32>} : memref<8x1xf32, #tpu.memory_space<vmem>>, vector<8x1xf32>,
    } else {
    }
    %c0 = arith.constant 0 : index
    %c0_1 = arith.constant 0 : index
    %3 = vector.load %arg2[%c0, %c0_1] : memref<8x16xf32, #tpu.memory_space<vmem>>, vector<8x16xf32>
    %c0_2 = arith.constant 0 : index
    %c0_3 = arith.constant 0 : index
    %4 = vector.load %arg3[%c0_2, %c0_3] : memref<8x16xf32, #tpu.memory_space<vmem>>, vector<8x16xf32>
    %c0_4 = arith.constant 0 : index
    %c0_5 = arith.constant 0 : index
    %5 = vector.load %arg5[%c0_4, %c0_5] : memref<8x1xf32, #tpu.memory_space<vmem>>, vector<8x1xf32>
    %cst = arith.constant dense<0xFF800000> : vector<8xf32>
    %6 = vector.multi_reduction <maximumf>, %3, %cst [1] : vector<8x16xf32> to vector<8xf32>
    %7 = vector.shape_cast %6 : vector<8xf32> to vector<8x1xf32>
    %8 = arith.maximumf %5, %7 : vector<8x1xf32>
    %9 = vector.broadcast %8 : vector<8x1xf32> to vector<8x16xf32>
    %10 = arith.subf %3, %9 : vector<8x16xf32>
    %cst_6 = arith.constant 0xFF800000 : f32
    %11 = vector.broadcast %cst_6 : f32 to vector<8x1xf32>
    %12 = arith.cmpf oeq, %5, %11 : vector<8x1xf32>
    %13 = arith.subf %5, %8 : vector<8x1xf32>
    %cst_7 = arith.constant 0.000000e+00 : f32
    %14 = vector.broadcast %cst_7 : f32 to vector<8x1xf32>
    %15 = arith.select %12, %14, %13 : vector<8x1xi1>, vector<8x1xf32>
    %c0_8 = arith.constant 0 : index
    %c0_9 = arith.constant 0 : index
    %16 = vector.load %arg6[%c0_8, %c0_9] : memref<8x1xf32, #tpu.memory_space<vmem>>, vector<8x1xf32>
    %17 = math.exp %15 : vector<8x1xf32>
    %18 = arith.mulf %16, %17 : vector<8x1xf32>
    %19 = math.exp %10 : vector<8x16xf32>
    %cst_10 = arith.constant dense<0.000000e+00> : vector<8xf32>
    %20 = vector.multi_reduction <add>, %19, %cst_10 [1] : vector<8x16xf32> to vector<8xf32>
    %21 = vector.shape_cast %20 : vector<8xf32> to vector<8x1xf32>
    %22 = arith.addf %18, %21 : vector<8x1xf32>
    %c0_11 = arith.constant 0 : index
    %c0_12 = arith.constant 0 : index
    %23 = vector.load %arg6[%c0_11, %c0_12] : memref<8x1xf32, #tpu.memory_space<vmem>>, vector<8x1xf32>
    tpu.vector_store %arg6[%c0_11, %c0_12], %22 {strides = array<i32>} : memref<8x1xf32, #tpu.memory_space<vmem>>, vector<8x1xf32>,
    %24 = arith.mulf %4, %10 : vector<8x16xf32>
    %c0_13 = arith.constant 0 : index
    %c0_14 = arith.constant 0 : index
    %25 = vector.load %arg8[%c0_13, %c0_14] : memref<8x1xf32, #tpu.memory_space<vmem>>, vector<8x1xf32>
    %c0_15 = arith.constant 0 : index
    %c0_16 = arith.constant 0 : index
    %26 = vector.load %arg7[%c0_15, %c0_16] : memref<8x1xf32, #tpu.memory_space<vmem>>, vector<8x1xf32>
    %27 = arith.mulf %26, %15 : vector<8x1xf32>
    %28 = arith.addf %25, %27 : vector<8x1xf32>
    %cst_17 = arith.constant dense<0.000000e+00> : vector<8xf32>
    %29 = vector.multi_reduction <add>, %24, %cst_17 [1] : vector<8x16xf32> to vector<8xf32>
    %30 = vector.shape_cast %29 : vector<8xf32> to vector<8x1xf32>
    %31 = arith.addf %28, %30 : vector<8x1xf32>
    %c0_18 = arith.constant 0 : index
    %c0_19 = arith.constant 0 : index
    %32 = vector.load %arg8[%c0_18, %c0_19] : memref<8x1xf32, #tpu.memory_space<vmem>>, vector<8x1xf32>
    tpu.vector_store %arg8[%c0_18, %c0_19], %31 {strides = array<i32>} : memref<8x1xf32, #tpu.memory_space<vmem>>, vector<8x1xf32>,
    %c0_20 = arith.constant 0 : index
    %c0_21 = arith.constant 0 : index
    %33 = vector.load %arg7[%c0_20, %c0_21] : memref<8x1xf32, #tpu.memory_space<vmem>>, vector<8x1xf32>
    %cst_22 = arith.constant dense<0.000000e+00> : vector<8xf32>
    %34 = vector.multi_reduction <add>, %4, %cst_22 [1] : vector<8x16xf32> to vector<8xf32>
    %35 = vector.shape_cast %34 : vector<8xf32> to vector<8x1xf32>
    %36 = arith.addf %33, %35 : vector<8x1xf32>
    %c0_23 = arith.constant 0 : index
    %c0_24 = arith.constant 0 : index
    %37 = vector.load %arg7[%c0_23, %c0_24] : memref<8x1xf32, #tpu.memory_space<vmem>>, vector<8x1xf32>
    tpu.vector_store %arg7[%c0_23, %c0_24], %36 {strides = array<i32>} : memref<8x1xf32, #tpu.memory_space<vmem>>, vector<8x1xf32>,
    %c0_25 = arith.constant 0 : index
    %c0_26 = arith.constant 0 : index
    %38 = vector.load %arg5[%c0_25, %c0_26] : memref<8x1xf32, #tpu.memory_space<vmem>>, vector<8x1xf32>
    tpu.vector_store %arg5[%c0_25, %c0_26], %8 {strides = array<i32>} : memref<8x1xf32, #tpu.memory_space<vmem>>, vector<8x1xf32>,
    %c0_i32_27 = arith.constant 0 : i32
    %39 = arith.cmpi eq, %arg1, %c0_i32_27 : i32
    %40 = arith.extui %39 : i1 to i32
    %c0_i32_28 = arith.constant 0 : i32
    %41 = arith.cmpi ne, %40, %c0_i32_28 : i32
    scf.if %41 {
      %c0_29 = arith.constant 0 : index
      %c0_30 = arith.constant 0 : index
      %42 = vector.load %arg6[%c0_29, %c0_30] : memref<8x1xf32, #tpu.memory_space<vmem>>, vector<8x1xf32>
      %43 = math.log %42 : vector<8x1xf32>
      %c0_31 = arith.constant 0 : index
      %c0_32 = arith.constant 0 : index
      %44 = vector.load %arg7[%c0_31, %c0_32] : memref<8x1xf32, #tpu.memory_space<vmem>>, vector<8x1xf32>
      %45 = arith.mulf %43, %44 : vector<8x1xf32>
      %c0_33 = arith.constant 0 : index
      %c0_34 = arith.constant 0 : index
      %46 = vector.load %arg8[%c0_33, %c0_34] : memref<8x1xf32, #tpu.memory_space<vmem>>, vector<8x1xf32>
      %47 = arith.subf %45, %46 : vector<8x1xf32>
      %c8_i32 = arith.constant 8 : i32
      %48 = arith.muli %arg0, %c8_i32 : i32
      %49 = tpu.iota {dimensions = array<i32: 0>} : vector<8x1xi32>
      %50 = vector.broadcast %48 : i32 to vector<8x1xi32>
      %51 = arith.addi %50, %49 : vector<8x1xi32>
      %c8_i32_35 = arith.constant 8 : i32
      %52 = vector.broadcast %c8_i32_35 : i32 to vector<8x1xi32>
      %53 = arith.cmpi slt, %51, %52 : vector<8x1xi32>
      %cst_36 = arith.constant 0.000000e+00 : f32
      %54 = vector.broadcast %cst_36 : f32 to vector<8x1xf32>
      %55 = arith.select %53, %47, %54 : vector<8x1xi1>, vector<8x1xf32>
      %56 = vector.shape_cast %55 : vector<8x1xf32> to vector<1x8x1xf32>
      %cst_37 = arith.constant dense<0.000000e+00> : vector<1xf32>
      %57 = vector.multi_reduction <add>, %56, %cst_37 [1, 2] : vector<1x8x1xf32> to vector<1xf32>
      %58 = vector.shape_cast %57 : vector<1xf32> to vector<1x1x1xf32>
      %59 = vector.extract %58[0, 0, 0] : f32 from vector<1x1x1xf32>
      %60 = vector.broadcast %59 : f32 to vector<1x8x128xf32>
      %c0_38 = arith.constant 0 : index
      %c0_39 = arith.constant 0 : index
      %c0_40 = arith.constant 0 : index
      %61 = vector.load %arg4[%c0_38, %c0_39, %c0_40] : memref<1x8x128xf32, #tpu.memory_space<vmem>>, vector<1x8x128xf32>
      tpu.vector_store %arg4[%c0_38, %c0_39, %c0_40], %60 {strides = array<i32>} : memref<1x8x128xf32, #tpu.memory_space<vmem>>, vector<1x8x128xf32>,
    } else {
    }
    return
  }
  func.func @transform_0(%arg0: i32, %arg1: i32) -> (i32, i32) {
    %c0_i32 = arith.constant 0 : i32
    return %arg0, %arg1 : i32, i32
  }
  func.func @transform_1(%arg0: i32, %arg1: i32) -> (i32, i32) {
    %c0_i32 = arith.constant 0 : i32
    return %arg0, %arg1 : i32, i32
  }
  func.func @transform_2(%arg0: i32, %arg1: i32) -> (i32, i32, i32) {
    %c0_i32 = arith.constant 0 : i32
    %c0_i32_0 = arith.constant 0 : i32
    %c0_i32_1 = arith.constant 0 : i32
    return %arg0, %c0_i32, %c0_i32_0 : i32, i32, i32
  }
}

</mosaic_0001>

<llo_original>
// kernel: tpu_custom_call.1
$region0: #{tpu_custom_call.1}
  #allocation0 [shape = 'u32[]', space=smem, size = 0x4, offset = 0x4, fixed_abs, tag = 'smem constant byte address 0x4 - core index']
  #allocation1 [shape = 'u32[72,128]{1,0:T(1,128)}', space=vmem, size = 0x9000, scoped, tag = 'internal scratch']
  #allocation2 [shape = 'f32[8,1]{1,0:T(8,128)}', space=vmem, size = 0x1000, scoped, tag = 'scratch operand']
  #allocation3 [shape = 'f32[8,1]{1,0:T(8,128)}', space=vmem, size = 0x1000, scoped, tag = 'scratch operand']
  #allocation4 [shape = 'f32[8,1]{1,0:T(8,128)}', space=vmem, size = 0x1000, scoped, tag = 'scratch operand']
  #allocation5 [shape = 'f32[8,1]{1,0:T(8,128)}', space=vmem, size = 0x1000, scoped, tag = 'scratch operand']
  %s0 = inlined_call_operand.hbm [shape: f32[8,16], index: 0, kind: input, shape index: {}]
  %s1 = inlined_call_operand.hbm [shape: f32[8,16], index: 1, kind: input, shape index: {}]
  %s2 = inlined_call_operand.hbm [shape: f32[1,8,128], index: 2, kind: output, shape index: {}]
  %s3 = sld [smem:[#allocation0]]
  $region34: #{tpu_custom_call.1} parent=0
    _
  %s5 = ssub.s32 1, %s3
  %s6 = scalar_select 0, %s5, %s3
  $region1: #{tpu_custom_call.1} parent=0
    #allocation6 [shape = 'u8[4096]{0}', space=vmem, size = 0x1000, scoped, tag = 'input window, operand 0, single buffered']
    #allocation7 [shape = 's32[1]{0}', space=sflag, size = 0x4, scoped, tag = 'scoped memory for tpu_custom_call.1']
    #allocation8 [shape = 's32[1]{0}', space=sflag, size = 0x4, scoped, tag = 'scoped memory for tpu_custom_call.1']
    #allocation9 [shape = 'u8[4096]{0}', space=vmem, size = 0x1000, scoped, tag = 'input window, operand 1, single buffered']
    #allocation10 [shape = 's32[1]{0}', space=sflag, size = 0x4, scoped, tag = 'scoped memory for tpu_custom_call.1']
    #allocation11 [shape = 'u8[4096]{0}', space=vmem, size = 0x1000, scoped, tag = 'output window, operand 0, single buffered']
    %7 = vsyncpa [#allocation7], 0
    %8 = vsyncpa [#allocation10], 0
    %9 = vsyncpa [#allocation8], 0
    // Predicated region
    $region2: #{tpu_custom_call.1} parent=1 // pred_check
      _
    $region3: #{tpu_custom_call.1} parent=1 // pred_check_branch
      %11 = sbr.rel (0) target = $region5
    $region4: #{tpu_custom_call.1} parent=1 // pred_region
      %13 = vsyncadd [#allocation7], 0
      %s15 = sshll.u32 %s0, 4
      %s16 = int_to_ptr.hbm [resolvable:$true] %s15
      %s17 = sshll.u32 [#allocation6], 4
      %s18 = int_to_ptr.vmem [resolvable:$true] %s17
      %20 = dma.hbm_to_vmem [thread:$0]  %s16, 128, %s18, [#allocation7]
    $region5: #{tpu_custom_call.1} parent=1 // pred_fallthru
      _
    // Predicated region
    $region6: #{tpu_custom_call.1} parent=1 // pred_check
      _
    $region7: #{tpu_custom_call.1} parent=1 // pred_check_branch
      %22 = sbr.rel (0) target = $region9
    $region8: #{tpu_custom_call.1} parent=1 // pred_region
      %24 = vsyncadd [#allocation10], 0
      %s26 = sshll.u32 %s1, 4
      %s27 = int_to_ptr.hbm [resolvable:$true] %s26
      %s28 = sshll.u32 [#allocation9], 4
      %s29 = int_to_ptr.vmem [resolvable:$true] %s28
      %31 = dma.hbm_to_vmem [thread:$0]  %s27, 128, %s29, [#allocation10]
    $region9: #{tpu_custom_call.1} parent=1 // pred_fallthru
      _
    // Predicated region
    $region10: #{tpu_custom_call.1} parent=1 // pred_check
      _
    $region11: #{tpu_custom_call.1} parent=1 // pred_check_branch
      %33 = sbr.rel (0) target = $region13
    $region12: #{tpu_custom_call.1} parent=1 // pred_region
      %35 = dma.done [#allocation7], 128
    $region13: #{tpu_custom_call.1} parent=1 // pred_fallthru
      _
    // Predicated region
    $region14: #{tpu_custom_call.1} parent=1 // pred_check
      _
    $region15: #{tpu_custom_call.1} parent=1 // pred_check_branch
      %37 = sbr.rel (0) target = $region17
    $region16: #{tpu_custom_call.1} parent=1 // pred_region
      %39 = dma.done [#allocation10], 128
    $region17: #{tpu_custom_call.1} parent=1 // pred_fallthru
      _
    %p40 = scmp.eq.s32.totalorder 0, 0
    // Predicated region
    $region18: #{tpu_custom_call.1} parent=1 // pred_check
      %p41 = pneg %p40
    $region19: #{tpu_custom_call.1} parent=1 // pred_check_branch
      %43 = sbr.rel (%p41) target = $region21
    $region20: #{tpu_custom_call.1} parent=1 // pred_region
      %vm44 = vcmask 7168
      %45 = vst.msk [vmem:[#allocation2] sm:$0xff] %vm44, -inf
      %46 = vst.msk [vmem:[#allocation3] sm:$0xff] %vm44, 0.0
      %47 = vst.msk [vmem:[#allocation4] sm:$0xff] %vm44, 0.0
      %48 = vst.msk [vmem:[#allocation5] sm:$0xff] %vm44, 0.0
    $region21: #{tpu_custom_call.1} parent=1 // pred_fallthru
      _
    %v49 = vld [vmem:[#allocation6] sm:$0xff]
    %v50 = vld [vmem:[#allocation9] sm:$0xff]
    %v51 = vld [vmem:[#allocation2] sm:$0xff]
    %vm52 = vcmask 130048
    %v53 = vsel %vm52, %v49, -inf
    %54 = vmax.xlane.f32.xlu0 %v53
    %v55 = vpop.xlane.xlu0 %54
    %v56 = vmax.f32 %v51, %v55
    %58 = vset.pattern.permute.xlu0 0
    %59 = vperm.xlu0 %58, %v56
    %v60 = vpop.permute.xlu0 %59
    %v62 = vsub.f32 %v49, %v60
    %vm63 = vcmp.eq.f32.partialorder %v51, -inf
    %v64 = vsub.f32 %v51, %v56
    %v65 = vsel %vm63, 0.0, %v64
    %v66 = vld [vmem:[#allocation3] sm:$0xff]
    %v67 = vmul.f32 %v65, 1.442695
    %v68 = vpow.pop %v67
    %v69 = vmul.f32 %v66, %v68
    %v70 = vmul.f32 %v62, 1.442695
    %v71 = vpow.pop %v70
    %v72 = vsel %vm52, %v71, 0.0
    %73 = vadd.xlane.f32.xlu0 %v72
    %v74 = vpop.xlane.xlu0 %73
    %v75 = vadd.f32 %v69, %v74
    %vm76 = vcmask 7168
    %77 = vst.msk [vmem:[#allocation3] sm:$0xff] %vm76, %v75
    %v78 = vmul.f32 %v50, %v62
    %v79 = vld [vmem:[#allocation5] sm:$0xff]
    %v80 = vld [vmem:[#allocation4] sm:$0xff]
    %v81 = vmul.f32 %v80, %v65
    %v82 = vadd.f32 %v79, %v81
    %v83 = vsel %vm52, %v78, 0.0
    %84 = vadd.xlane.f32.xlu0 %v83
    %v85 = vpop.xlane.xlu0 %84
    %v86 = vadd.f32 %v82, %v85
    %87 = vst.msk [vmem:[#allocation5] sm:$0xff] %vm76, %v86
    %v88 = vld [vmem:[#allocation4] sm:$0xff]
    %v89 = vsel %vm52, %v50, 0.0
    %90 = vadd.xlane.f32.xlu0 %v89
    %v91 = vpop.xlane.xlu0 %90
    %v92 = vadd.f32 %v88, %v91
    %93 = vst.msk [vmem:[#allocation4] sm:$0xff] %vm76, %v92
    %94 = vst.msk [vmem:[#allocation2] sm:$0xff] %vm76, %v56
    // Predicated region
    $region22: #{tpu_custom_call.1} parent=1 // pred_check
      %p95 = pneg %p40
    $region23: #{tpu_custom_call.1} parent=1 // pred_check_branch
      %97 = sbr.rel (%p95) target = $region25
    $region24: #{tpu_custom_call.1} parent=1 // pred_region
      %v98 = vld [vmem:[#allocation3] sm:$0xff]
      %v99 = vlog2.pop %v98
      %v100 = vmul.f32 %v99, 0.6931472
      %v101 = vld [vmem:[#allocation4] sm:$0xff]
      %v102 = vmul.f32 %v100, %v101
      %v103 = vld [vmem:[#allocation5] sm:$0xff]
      %v104 = vsub.f32 %v102, %v103
      %s105 = smul.u32 0, 8
      %v106 = vlaneseq
      %v107 = vshrl.u32 %v106, 7
      %v108 = vstv %s105
      %v109 = vadd.s32 %v108, %v107
      %vm110 = vcmp.lt.s32.totalorder %v109, 8
      %v111 = vsel %vm110, %v104, 0.0
      %v112 = vsel %vm76, %v111, 0.0
      %113 = vadd.xlane.f32.xlu0 %v112
      %v114 = vpop.xlane.xlu0 %113
      %v115 = vrot.slane %v114, 4
      %v116 = vadd.f32 %v114, %v115
      %v117 = vrot.slane %v116, 2
      %v118 = vadd.f32 %v116, %v117
      %v119 = vrot.slane %v118, 1
      %v120 = vadd.f32 %v118, %v119
      %s121 = vtos %v120
      %v122 = vstv %s121
      %123 = vst [vmem:[#allocation11] sm:$0xff] %v122
    $region25: #{tpu_custom_call.1} parent=1 // pred_fallthru
      _
    // Predicated region
    $region26: #{tpu_custom_call.1} parent=1 // pred_check
      _
    $region27: #{tpu_custom_call.1} parent=1 // pred_check_branch
      %125 = sbr.rel (0) target = $region29
    $region28: #{tpu_custom_call.1} parent=1 // pred_region
      %127 = vsyncadd [#allocation8], 0
      %s129 = sshll.u32 [#allocation11], 4
      %s130 = int_to_ptr.vmem [resolvable:$true] %s129
      %s131 = sshll.u32 %s2, 4
      %s132 = int_to_ptr.hbm [resolvable:$true] %s131
      %134 = dma.vmem_to_hbm [thread:$0]  %s130, 128, %s132, [#allocation8]
    $region29: #{tpu_custom_call.1} parent=1 // pred_fallthru
      _
    // Predicated region
    $region30: #{tpu_custom_call.1} parent=1 // pred_check
      _
    $region31: #{tpu_custom_call.1} parent=1 // pred_check_branch
      %136 = sbr.rel (0) target = $region33
    $region32: #{tpu_custom_call.1} parent=1 // pred_region
      %138 = dma.done [#allocation8], 128
    $region33: #{tpu_custom_call.1} parent=1 // pred_fallthru
      _
    %139 = vsyncpa [#allocation7], 1
    %140 = vsyncpa [#allocation10], 1
    %141 = vsyncpa [#allocation8], 1

</llo_original>
